<compile_context>
chip_gen: v7x
topology: tpu7x:2x2x1
jax: 0.10.0
libtpu: 0.0.40
codegen_flags: <defaults>
</compile_context>

<pallas_src>
import functools

import jax
import jax.numpy as jnp
from jax import lax
from jax.experimental import pallas as pl
from jax.experimental.pallas import tpu as pltpu


def _round_up(x: int, m: int) -> int:
    return ((x + m - 1) // m) * m


def _vmem_capacity_bytes() -> int:
    """Per-core VMEM capacity; conservative 64 MiB (v7x) fallback."""
    try:
        cap = getattr(pltpu.get_tpu_info(), "vmem_capacity_bytes", None)
        if cap:
            return int(cap)
    except Exception:
        pass
    return 64 << 20


def _choose_tiles(n: int, c: int, itemsize: int, vmem_cap: int) -> tuple[int, int]:
    sub = 8 * max(1, 4 // itemsize)       # sublane packing: 8 f32 / 16 bf16 / 32 int8
    min_rows = 8 * sub
    budget = int(vmem_cap * 0.45)         # streamed working set <= ~half of VMEM
    per_elem = 2 * itemsize + 8           # dbl-buffered native input + ~2x f32 temps

    if c * per_elem * min_rows <= budget:
        tile_c = c                         # whole class axis resident: single pass
        tile_n = budget // max(1, c * per_elem)
    else:
        # Huge vocab: tile the class axis too (online logsumexp over grid axis 1).
        tile_n = min_rows
        tile_c = (budget // (tile_n * per_elem)) // 128 * 128
        tile_c = max(128, min(tile_c, _round_up(c, 128)))

    tile_n = min(int(tile_n), 512)         # bounds per-row scratch + relayout cost
    if n > sub:                            # >= 2 row tiles when possible (v7x: 2 TCs)
        tile_n = min(tile_n, _round_up(-(-n // 2), sub))
    tile_n = max(sub, (tile_n // sub) * sub)
    tile_n = min(tile_n, _round_up(n, sub))
    return tile_n, tile_c


def _ce_kernel(targets_ref, logits_ref, out_ref,
               m_scr, l_scr, tgt_scr, tcol_scr, *,
               n_rows: int, n_cols: int, tile_n: int, tile_c: int, mask_cols: bool):
    """Grid = (row tiles, class tiles). Online logsumexp + target-logit accumulation."""
    i = pl.program_id(0)                  # row-tile index ("parallel")
    j = pl.program_id(1)                  # class-tile index ("arbitrary")
    last_j = pl.num_programs(1) - 1

    # ---- once per row tile: init state + relayout lane-dense targets ----------
    @pl.when(j == 0)
    def _init():
        m_scr[...] = jnp.full_like(m_scr, jnp.finfo(jnp.float32).min)
        l_scr[...] = jnp.zeros_like(l_scr)
        tgt_scr[...] = jnp.zeros_like(tgt_scr)
        # lane -> sublane relayout of the (1, tile_n) target row into a
        # (tile_n, 1) column via a diagonal select (iota/compare/reduce only).
        t_row = targets_ref[0].astype(jnp.float32)                       # (1, tile_n)
        rr = lax.broadcasted_iota(jnp.int32, (tile_n, tile_n), 0)
        ll = lax.broadcasted_iota(jnp.int32, (tile_n, tile_n), 1)
        tcol_scr[...] = jnp.sum(jnp.where(rr == ll, t_row, 0.0),
                                axis=1, keepdims=True).astype(jnp.int32)  # (tile_n, 1)

    x = logits_ref[...]                                                   # native dtype
    cols = j * tile_c + lax.broadcasted_iota(jnp.int32, (1, tile_c), 1)   # lane iota

    if mask_cols:
        # Last class tile may overrun C: mask padded lanes (native dtype, -inf).
        x = jnp.where(cols < n_cols, x, jnp.asarray(-jnp.inf, dtype=x.dtype))

    # Target logit: one-hot select in the NATIVE dtype (exact), accumulate in f32.
    hit = cols == tcol_scr[...]                                           # (tile_n, tile_c)
    tgt_scr[...] += jnp.sum(jnp.where(hit, x, jnp.zeros((), x.dtype)),
                            axis=-1, keepdims=True).astype(jnp.float32)

    # Online logsumexp: max in native dtype (exact), exp / sums in f32.
    m_prev = m_scr[...]
    m_new = jnp.maximum(m_prev, jnp.max(x, axis=-1, keepdims=True).astype(jnp.float32))
    p = jnp.exp(x.astype(jnp.float32) - m_new)
    l_scr[...] = l_scr[...] * jnp.exp(m_prev - m_new) + jnp.sum(p, axis=-1, keepdims=True)
    m_scr[...] = m_new

    # ---- last class tile: per-row loss -> masked tile-level partial sum -------
    @pl.when(j == last_j)
    def _finalize():
        per_row = jnp.log(l_scr[...]) + m_scr[...] - tgt_scr[...]         # (tile_n, 1)
        rows = i * tile_n + lax.broadcasted_iota(jnp.int32, (tile_n, 1), 0)
        masked = jnp.where(rows < n_rows, per_row, 0.0)   # where (NOT *mask): drops NaN
        out_ref[0] = jnp.sum(masked, keepdims=True)                        # (1, 1)


def cross_entropy_loss(outputs: jax.Array, targets: jax.Array,
                       *, tile_n: int | None = None, tile_c: int | None = None) -> jax.Array:
    """Mean cross-entropy over the batch (equivalent to nn.CrossEntropyLoss())."""
    n, c = outputs.shape
    itemsize = jnp.dtype(outputs.dtype).itemsize
    sub = 8 * max(1, 4 // itemsize)
    vmem_cap = _vmem_capacity_bytes()

    auto_n, auto_c = _choose_tiles(n, c, itemsize, vmem_cap)
    tile_n = auto_n if tile_n is None else max(sub, (int(tile_n) // sub) * sub)
    tile_n = min(tile_n, _round_up(n, sub))
    if tile_c is None:
        tile_c = auto_c
    else:
        tile_c = int(tile_c)
        if tile_c != c and tile_c % 128 != 0:
            raise ValueError("tile_c must equal C or be a multiple of 128")
        if tile_c != c:
            tile_c = min(tile_c, _round_up(c, 128))

    num_row = -(-n // tile_n)
    num_col = -(-c // tile_c)
    mask_cols = (c % tile_c) != 0
    padded_n = num_row * tile_n

    # Lane-dense per-tile targets: one contiguous 4*tile_n-byte DMA per row tile.
    t = targets.astype(jnp.int32).reshape(n)
    if padded_n != n:
        t = jnp.pad(t, (0, padded_n - n))          # padded rows masked in-kernel
    targets_3d = t.reshape(num_row, 1, tile_n)

    # VMEM estimate including f32 intermediates + scratch (review item 3).
    est = (2 * tile_n * tile_c * itemsize          # double-buffered native logits tile
           + 2 * tile_n * tile_c * 4               # f32 shifted / exp temporaries
           + 3 * tile_n * tile_n * 4               # target-relayout temporaries (worst case)
           + 4 * tile_n * 128 * 4                  # (tile_n, 1) VMEM scratch, lane-padded
           + 4 * tile_n * 4                        # targets double buffer
           + (1 << 16))
    vmem_limit = max(int(1.5 * est), 32 << 20)
    vmem_limit = min(vmem_limit, vmem_cap - (8 << 20))
    vmem_limit = max(vmem_limit, est + (2 << 20))  # never below the estimate itself
    vmem_limit = min(vmem_limit, vmem_cap - (4 << 20))

    kernel = functools.partial(_ce_kernel, n_rows=n, n_cols=c,
                               tile_n=tile_n, tile_c=tile_c, mask_cols=mask_cols)

    partial = pl.pallas_call(
        kernel,
        out_shape=jax.ShapeDtypeStruct((num_row, 1, 1), jnp.float32),
        grid=(num_row, num_col),
        in_specs=[
            pl.BlockSpec((1, 1, tile_n), lambda i, j: (i, 0, 0)),   # lane-dense targets
            pl.BlockSpec((tile_n, tile_c), lambda i, j: (i, j)),    # logits (native dtype)
        ],
        out_specs=pl.BlockSpec((1, 1, 1), lambda i, j: (i, 0, 0)),  # per-tile partial sum
        scratch_shapes=[
            pltpu.VMEM((tile_n, 1), jnp.float32),   # running row max
            pltpu.VMEM((tile_n, 1), jnp.float32),   # running sum-exp
            pltpu.VMEM((tile_n, 1), jnp.float32),   # accumulated target logit
            pltpu.VMEM((tile_n, 1), jnp.int32),     # per-row targets (relayout cache)
        ],
        compiler_params=pltpu.CompilerParams(
            dimension_semantics=("parallel", "arbitrary"),
            vmem_limit_bytes=int(vmem_limit),
        ),
    )(targets_3d, outputs)

    # Tiny final reduction (one f32 per row tile) in plain JAX.
    return jnp.sum(partial) / jnp.float32(n)


if __name__ == "__main__":
    key = jax.random.PRNGKey(0)
    k1, k2, k3, k4, k5, k6 = jax.random.split(key, 6)

    def ref_ce(logits, tgt):
        x = logits.astype(jnp.float32)
        lse = jax.scipy.special.logsumexp(x, axis=-1)
        return jnp.mean(lse - x[jnp.arange(x.shape[0]), tgt])

    # Case 1: small f32 batch, single tile.
    N1, C1 = 8, 32
    x1 = jax.random.normal(k1, (N1, C1), jnp.float32)
    t1 = jax.random.randint(k2, (N1,), 0, C1, dtype=jnp.int32)
    l1 = cross_entropy_loss(x1, t1)
    jax.block_until_ready(l1)
    assert jnp.allclose(l1, ref_ce(x1, t1), atol=1e-5, rtol=1e-5), (l1, ref_ce(x1, t1))

    # Case 2: native bf16 logits, 2 row tiles, tail-row masking (N=20 -> tile_n=16).
    N2, C2 = 20, 128
    x2 = jax.random.normal(k3, (N2, C2), jnp.float32).astype(jnp.bfloat16)
    t2 = jax.random.randint(k4, (N2,), 0, C2, dtype=jnp.int32)
    l2 = cross_entropy_loss(x2, t2)
    jax.block_until_ready(l2)
    assert jnp.allclose(l2, ref_ce(x2, t2), atol=1e-4, rtol=1e-4), (l2, ref_ce(x2, t2))

    # Case 3: forced class-axis tiling -> online logsumexp + ragged last class tile.
    N3, C3 = 24, 200
    x3 = jax.random.normal(k5, (N3, C3), jnp.float32)
    t3 = jax.random.randint(k6, (N3,), 0, C3, dtype=jnp.int32)
    l3 = cross_entropy_loss(x3, t3, tile_n=16, tile_c=128)
    jax.block_until_ready(l3)
    assert jnp.allclose(l3, ref_ce(x3, t3), atol=1e-5, rtol=1e-5), (l3, ref_ce(x3, t3))

    print("KERNEL_OK")
</pallas_src>

<mosaic_0001>
module attributes {stable_mosaic.version = 11 : i64} {
  func.func @_ce_kernel(%arg0: i32, %arg1: i32, %arg2: memref<1x1x8xi32, #tpu.memory_space<vmem>>, %arg3: memref<8x32xf32, #tpu.memory_space<vmem>>, %arg4: memref<1x1x1xf32, #tpu.memory_space<vmem>>, %arg5: memref<8x1xf32, #tpu.memory_space<vmem>>, %arg6: memref<8x1xf32, #tpu.memory_space<vmem>>, %arg7: memref<8x1xf32, #tpu.memory_space<vmem>>, %arg8: memref<8x1xi32, #tpu.memory_space<vmem>>) attributes {dimension_semantics = [#tpu.dimension_semantics<parallel>, #tpu.dimension_semantics<arbitrary>], iteration_bounds = array<i64: 1, 1>, scalar_prefetch = 0 : i64, scratch_operands = 4 : i64, tpu.core_type = #tpu.core_type<tc>, window_params = [{transform_indices = @transform_0, window_bounds = array<i64: 1, 1, 8>}, {transform_indices = @transform_1, window_bounds = array<i64: 8, 32>}, {transform_indices = @transform_2, window_bounds = array<i64: 1, 1, 1>}]} {
    %c0_i32 = arith.constant 0 : i32
    %0 = arith.cmpi eq, %arg1, %c0_i32 : i32
    %1 = arith.extui %0 : i1 to i32
    %c0_i32_0 = arith.constant 0 : i32
    %2 = arith.cmpi ne, %1, %c0_i32_0 : i32
    scf.if %2 {
      %cst_21 = arith.constant -3.40282347E+38 : f32
      %38 = vector.broadcast %cst_21 : f32 to vector<8x1xf32>
      %c0_22 = arith.constant 0 : index
      %c0_23 = arith.constant 0 : index
      %39 = vector.load %arg5[%c0_22, %c0_23] : memref<8x1xf32, #tpu.memory_space<vmem>>, vector<8x1xf32>
      tpu.vector_store %arg5[%c0_22, %c0_23], %38 {strides = array<i32>} : memref<8x1xf32, #tpu.memory_space<vmem>>, vector<8x1xf32>,
      %cst_24 = arith.constant 0.000000e+00 : f32
      %40 = vector.broadcast %cst_24 : f32 to vector<8x1xf32>
      %c0_25 = arith.constant 0 : index
      %c0_26 = arith.constant 0 : index
      %41 = vector.load %arg6[%c0_25, %c0_26] : memref<8x1xf32, #tpu.memory_space<vmem>>, vector<8x1xf32>
      tpu.vector_store %arg6[%c0_25, %c0_26], %40 {strides = array<i32>} : memref<8x1xf32, #tpu.memory_space<vmem>>, vector<8x1xf32>,
      %cst_27 = arith.constant 0.000000e+00 : f32
      %42 = vector.broadcast %cst_27 : f32 to vector<8x1xf32>
      %c0_28 = arith.constant 0 : index
      %c0_29 = arith.constant 0 : index
      %43 = vector.load %arg7[%c0_28, %c0_29] : memref<8x1xf32, #tpu.memory_space<vmem>>, vector<8x1xf32>
      tpu.vector_store %arg7[%c0_28, %c0_29], %42 {strides = array<i32>} : memref<8x1xf32, #tpu.memory_space<vmem>>, vector<8x1xf32>,
      %c0_30 = arith.constant 0 : index
      %c0_31 = arith.constant 0 : index
      %c0_32 = arith.constant 0 : index
      %44 = vector.load %arg2[%c0_30, %c0_31, %c0_32] : memref<1x1x8xi32, #tpu.memory_space<vmem>>, vector<1x1x8xi32>
      %45 = vector.shape_cast %44 : vector<1x1x8xi32> to vector<1x8xi32>
      %46 = arith.sitofp %45 : vector<1x8xi32> to vector<1x8xf32>
      %47 = tpu.iota {dimensions = array<i32: 0>} : vector<8x8xi32>
      %48 = tpu.iota {dimensions = array<i32: 1>} : vector<8x8xi32>
      %49 = arith.cmpi eq, %47, %48 : vector<8x8xi32>
      %cst_33 = arith.constant 0.000000e+00 : f32
      %50 = vector.shape_cast %46 : vector<1x8xf32> to vector<1x8xf32>
      %51 = vector.broadcast %50 : vector<1x8xf32> to vector<8x8xf32>
      %52 = vector.broadcast %cst_33 : f32 to vector<8x8xf32>
      %53 = arith.select %49, %51, %52 : vector<8x8xi1>, vector<8x8xf32>
      %cst_34 = arith.constant dense<0.000000e+00> : vector<8xf32>
      %54 = vector.multi_reduction <add>, %53, %cst_34 [1] : vector<8x8xf32> to vector<8xf32>
      %55 = vector.shape_cast %54 : vector<8xf32> to vector<8x1xf32>
      %56 = arith.fptosi %55 : vector<8x1xf32> to vector<8x1xi32>
      %c0_35 = arith.constant 0 : index
      %c0_36 = arith.constant 0 : index
      %57 = vector.load %arg8[%c0_35, %c0_36] : memref<8x1xi32, #tpu.memory_space<vmem>>, vector<8x1xi32>
      tpu.vector_store %arg8[%c0_35, %c0_36], %56 {strides = array<i32>} : memref<8x1xi32, #tpu.memory_space<vmem>>, vector<8x1xi32>,
    } else {
    }
    %c0 = arith.constant 0 : index
    %c0_1 = arith.constant 0 : index
    %3 = vector.load %arg3[%c0, %c0_1] : memref<8x32xf32, #tpu.memory_space<vmem>>, vector<8x32xf32>
    %c32_i32 = arith.constant 32 : i32
    %4 = arith.muli %arg1, %c32_i32 : i32
    %5 = tpu.iota {dimensions = array<i32: 1>} : vector<1x32xi32>
    %6 = vector.broadcast %4 : i32 to vector<1x32xi32>
    %7 = arith.addi %6, %5 : vector<1x32xi32>
    %c0_2 = arith.constant 0 : index
    %c0_3 = arith.constant 0 : index
    %8 = vector.load %arg8[%c0_2, %c0_3] : memref<8x1xi32, #tpu.memory_space<vmem>>, vector<8x1xi32>
    %9 = vector.broadcast %7 : vector<1x32xi32> to vector<8x32xi32>
    %10 = vector.broadcast %8 : vector<8x1xi32> to vector<8x32xi32>
    %11 = arith.cmpi eq, %9, %10 : vector<8x32xi32>
    %c0_4 = arith.constant 0 : index
    %c0_5 = arith.constant 0 : index
    %12 = vector.load %arg7[%c0_4, %c0_5] : memref<8x1xf32, #tpu.memory_space<vmem>>, vector<8x1xf32>
    %cst = arith.constant 0.000000e+00 : f32
    %13 = vector.broadcast %cst : f32 to vector<8x32xf32>
    %14 = arith.select %11, %3, %13 : vector<8x32xi1>, vector<8x32xf32>
    %cst_6 = arith.constant dense<0.000000e+00> : vector<8xf32>
    %15 = vector.multi_reduction <add>, %14, %cst_6 [1] : vector<8x32xf32> to vector<8xf32>
    %16 = vector.shape_cast %15 : vector<8xf32> to vector<8x1xf32>
    %17 = arith.addf %12, %16 : vector<8x1xf32>
    %c0_7 = arith.constant 0 : index
    %c0_8 = arith.constant 0 : index
    %18 = vector.load %arg7[%c0_7, %c0_8] : memref<8x1xf32, #tpu.memory_space<vmem>>, vector<8x1xf32>
    tpu.vector_store %arg7[%c0_7, %c0_8], %17 {strides = array<i32>} : memref<8x1xf32, #tpu.memory_space<vmem>>, vector<8x1xf32>,
    %c0_9 = arith.constant 0 : index
    %c0_10 = arith.constant 0 : index
    %19 = vector.load %arg5[%c0_9, %c0_10] : memref<8x1xf32, #tpu.memory_space<vmem>>, vector<8x1xf32>
    %cst_11 = arith.constant dense<0xFF800000> : vector<8xf32>
    %20 = vector.multi_reduction <maximumf>, %3, %cst_11 [1] : vector<8x32xf32> to vector<8xf32>
    %21 = vector.shape_cast %20 : vector<8xf32> to vector<8x1xf32>
    %22 = arith.maximumf %19, %21 : vector<8x1xf32>
    %23 = vector.broadcast %22 : vector<8x1xf32> to vector<8x32xf32>
    %24 = arith.subf %3, %23 : vector<8x32xf32>
    %25 = math.exp %24 : vector<8x32xf32>
    %c0_12 = arith.constant 0 : index
    %c0_13 = arith.constant 0 : index
    %26 = vector.load %arg6[%c0_12, %c0_13] : memref<8x1xf32, #tpu.memory_space<vmem>>, vector<8x1xf32>
    %27 = arith.subf %19, %22 : vector<8x1xf32>
    %28 = math.exp %27 : vector<8x1xf32>
    %29 = arith.mulf %26, %28 : vector<8x1xf32>
    %cst_14 = arith.constant dense<0.000000e+00> : vector<8xf32>
    %30 = vector.multi_reduction <add>, %25, %cst_14 [1] : vector<8x32xf32> to vector<8xf32>
    %31 = vector.shape_cast %30 : vector<8xf32> to vector<8x1xf32>
    %32 = arith.addf %29, %31 : vector<8x1xf32>
    %c0_15 = arith.constant 0 : index
    %c0_16 = arith.constant 0 : index
    %33 = vector.load %arg6[%c0_15, %c0_16] : memref<8x1xf32, #tpu.memory_space<vmem>>, vector<8x1xf32>
    tpu.vector_store %arg6[%c0_15, %c0_16], %32 {strides = array<i32>} : memref<8x1xf32, #tpu.memory_space<vmem>>, vector<8x1xf32>,
    %c0_17 = arith.constant 0 : index
    %c0_18 = arith.constant 0 : index
    %34 = vector.load %arg5[%c0_17, %c0_18] : memref<8x1xf32, #tpu.memory_space<vmem>>, vector<8x1xf32>
    tpu.vector_store %arg5[%c0_17, %c0_18], %22 {strides = array<i32>} : memref<8x1xf32, #tpu.memory_space<vmem>>, vector<8x1xf32>,
    %c0_i32_19 = arith.constant 0 : i32
    %35 = arith.cmpi eq, %arg1, %c0_i32_19 : i32
    %36 = arith.extui %35 : i1 to i32
    %c0_i32_20 = arith.constant 0 : i32
    %37 = arith.cmpi ne, %36, %c0_i32_20 : i32
    scf.if %37 {
      %c0_21 = arith.constant 0 : index
      %c0_22 = arith.constant 0 : index
      %38 = vector.load %arg6[%c0_21, %c0_22] : memref<8x1xf32, #tpu.memory_space<vmem>>, vector<8x1xf32>
      %39 = math.log %38 : vector<8x1xf32>
      %c0_23 = arith.constant 0 : index
      %c0_24 = arith.constant 0 : index
      %40 = vector.load %arg5[%c0_23, %c0_24] : memref<8x1xf32, #tpu.memory_space<vmem>>, vector<8x1xf32>
      %41 = arith.addf %39, %40 : vector<8x1xf32>
      %c0_25 = arith.constant 0 : index
      %c0_26 = arith.constant 0 : index
      %42 = vector.load %arg7[%c0_25, %c0_26] : memref<8x1xf32, #tpu.memory_space<vmem>>, vector<8x1xf32>
      %43 = arith.subf %41, %42 : vector<8x1xf32>
      %c8_i32 = arith.constant 8 : i32
      %44 = arith.muli %arg0, %c8_i32 : i32
      %45 = tpu.iota {dimensions = array<i32: 0>} : vector<8x1xi32>
      %46 = vector.broadcast %44 : i32 to vector<8x1xi32>
      %47 = arith.addi %46, %45 : vector<8x1xi32>
      %c8_i32_27 = arith.constant 8 : i32
      %48 = vector.broadcast %c8_i32_27 : i32 to vector<8x1xi32>
      %49 = arith.cmpi slt, %47, %48 : vector<8x1xi32>
      %cst_28 = arith.constant 0.000000e+00 : f32
      %50 = vector.broadcast %cst_28 : f32 to vector<8x1xf32>
      %51 = arith.select %49, %43, %50 : vector<8x1xi1>, vector<8x1xf32>
      %52 = vector.shape_cast %51 : vector<8x1xf32> to vector<1x8x1xf32>
      %cst_29 = arith.constant dense<0.000000e+00> : vector<1xf32>
      %53 = vector.multi_reduction <add>, %52, %cst_29 [1, 2] : vector<1x8x1xf32> to vector<1xf32>
      %54 = vector.shape_cast %53 : vector<1xf32> to vector<1x1x1xf32>
      %55 = vector.extract %54[0, 0, 0] : f32 from vector<1x1x1xf32>
      %56 = vector.broadcast %55 : f32 to vector<1x1xf32>
      %c0_30 = arith.constant 0 : index
      %c0_31 = arith.constant 0 : index
      %c0_32 = arith.constant 0 : index
      %57 = vector.load %arg4[%c0_30, %c0_31, %c0_32] : memref<1x1x1xf32, #tpu.memory_space<vmem>>, vector<1x1x1xf32>
      %58 = vector.shape_cast %57 : vector<1x1x1xf32> to vector<1x1xf32>
      %59 = vector.shape_cast %56 : vector<1x1xf32> to vector<1x1x1xf32>
      tpu.vector_store %arg4[%c0_30, %c0_31, %c0_32], %59 {strides = array<i32>} : memref<1x1x1xf32, #tpu.memory_space<vmem>>, vector<1x1x1xf32>,
    } else {
    }
    return
  }
  func.func @transform_0(%arg0: i32, %arg1: i32) -> (i32, i32, i32) {
    %c0_i32 = arith.constant 0 : i32
    %c0_i32_0 = arith.constant 0 : i32
    %c0_i32_1 = arith.constant 0 : i32
    return %arg0, %c0_i32, %c0_i32_0 : i32, i32, i32
  }
  func.func @transform_1(%arg0: i32, %arg1: i32) -> (i32, i32) {
    %c0_i32 = arith.constant 0 : i32
    return %arg0, %arg1 : i32, i32
  }
  func.func @transform_2(%arg0: i32, %arg1: i32) -> (i32, i32, i32) {
    %c0_i32 = arith.constant 0 : i32
    %c0_i32_0 = arith.constant 0 : i32
    %c0_i32_1 = arith.constant 0 : i32
    return %arg0, %c0_i32, %c0_i32_0 : i32, i32, i32
  }
}

</mosaic_0001>

<llo_original>
// kernel: tpu_custom_call.1
$region0: #{tpu_custom_call.1}
  #allocation0 [shape = 'u32[]', space=smem, size = 0x4, offset = 0x4, fixed_abs, tag = 'smem constant byte address 0x4 - core index']
  #allocation1 [shape = 'u32[144,128]{1,0:T(1,128)}', space=vmem, size = 0x12000, scoped, tag = 'internal scratch']
  #allocation2 [shape = 'f32[8,1]{1,0:T(8,128)}', space=vmem, size = 0x1000, scoped, tag = 'scratch operand']
  #allocation3 [shape = 'f32[8,1]{1,0:T(8,128)}', space=vmem, size = 0x1000, scoped, tag = 'scratch operand']
  #allocation4 [shape = 'f32[8,1]{1,0:T(8,128)}', space=vmem, size = 0x1000, scoped, tag = 'scratch operand']
  #allocation5 [shape = 's32[8,1]{1,0:T(8,128)}', space=vmem, size = 0x1000, scoped, tag = 'scratch operand']
  %s0 = inlined_call_operand.hbm [shape: s32[1,1,8], index: 0, kind: input, shape index: {}]
  %s1 = inlined_call_operand.hbm [shape: f32[8,32], index: 1, kind: input, shape index: {}]
  %s2 = inlined_call_operand.hbm [shape: f32[1,1,1], index: 2, kind: output, shape index: {}]
  %s3 = sld [smem:[#allocation0]]
  $region34: #{tpu_custom_call.1} parent=0
    _
  %s5 = ssub.s32 1, %s3
  %s6 = scalar_select 0, %s5, %s3
  $region1: #{tpu_custom_call.1} parent=0
    #allocation6 [shape = 'u8[512]{0}', space=vmem, size = 0x400, scoped, tag = 'input window, operand 0, single buffered']
    #allocation7 [shape = 's32[1]{0}', space=sflag, size = 0x4, scoped, tag = 'scoped memory for tpu_custom_call.1']
    #allocation8 [shape = 's32[1]{0}', space=sflag, size = 0x4, scoped, tag = 'scoped memory for tpu_custom_call.1']
    #allocation9 [shape = 'u8[4096]{0}', space=vmem, size = 0x1000, scoped, tag = 'input window, operand 1, single buffered']
    #allocation10 [shape = 's32[1]{0}', space=sflag, size = 0x4, scoped, tag = 'scoped memory for tpu_custom_call.1']
    #allocation11 [shape = 'u8[512]{0}', space=vmem, size = 0x400, scoped, tag = 'output window, operand 0, single buffered']
    %7 = vsyncpa [#allocation7], 0
    %8 = vsyncpa [#allocation10], 0
    %9 = vsyncpa [#allocation8], 0
    // Predicated region
    $region2: #{tpu_custom_call.1} parent=1 // pred_check
      _
    $region3: #{tpu_custom_call.1} parent=1 // pred_check_branch
      %11 = sbr.rel (0) target = $region5
    $region4: #{tpu_custom_call.1} parent=1 // pred_region
      %s13 = ssub.s32 16, 16
      %14 = vsyncadd [#allocation7], %s13
      %s16 = sshll.u32 [#allocation6], 4
      %s17 = int_to_ptr.vmem [resolvable:$true] %s16
      %19 = dma.hbm_to_vmem [thread:$0]  %s0, 16, %s17, [#allocation7]
    $region5: #{tpu_custom_call.1} parent=1 // pred_fallthru
      _
    // Predicated region
    $region6: #{tpu_custom_call.1} parent=1 // pred_check
      _
    $region7: #{tpu_custom_call.1} parent=1 // pred_check_branch
      %21 = sbr.rel (0) target = $region9
    $region8: #{tpu_custom_call.1} parent=1 // pred_region
      %s23 = ssub.s32 128, 128
      %24 = vsyncadd [#allocation10], %s23
      %s26 = sshll.u32 [#allocation9], 4
      %s27 = int_to_ptr.vmem [resolvable:$true] %s26
      %29 = dma.hbm_to_vmem [thread:$0]  %s1, 128, %s27, [#allocation10]
    $region9: #{tpu_custom_call.1} parent=1 // pred_fallthru
      _
    // Predicated region
    $region10: #{tpu_custom_call.1} parent=1 // pred_check
      _
    $region11: #{tpu_custom_call.1} parent=1 // pred_check_branch
      %31 = sbr.rel (0) target = $region13
    $region12: #{tpu_custom_call.1} parent=1 // pred_region
      %32 = dma.done [#allocation7], 16
    $region13: #{tpu_custom_call.1} parent=1 // pred_fallthru
      _
    // Predicated region
    $region14: #{tpu_custom_call.1} parent=1 // pred_check
      _
    $region15: #{tpu_custom_call.1} parent=1 // pred_check_branch
      %34 = sbr.rel (0) target = $region17
    $region16: #{tpu_custom_call.1} parent=1 // pred_region
      %35 = dma.done [#allocation10], 128
    $region17: #{tpu_custom_call.1} parent=1 // pred_fallthru
      _
    %p36 = scmp.eq.s32.totalorder 0, 0
    // Predicated region
    $region18: #{tpu_custom_call.1} parent=1 // pred_check
      %p37 = pneg %p36
    $region19: #{tpu_custom_call.1} parent=1 // pred_check_branch
      %39 = sbr.rel (%p37) target = $region21
    $region20: #{tpu_custom_call.1} parent=1 // pred_region
      %vm40 = vcmask 7168
      %41 = vst.msk [vmem:[#allocation2] sm:$0xff] %vm40, -3.4028235e+38
      %42 = vst.msk [vmem:[#allocation3] sm:$0xff] %vm40, 0.0
      %43 = vst.msk [vmem:[#allocation4] sm:$0xff] %vm40, 0.0
      %v44 = vld [vmem:[#allocation6] sm:$0x1]
      %v45 = vcvt.s32.f32 %v44
      %v46 = vlaneseq
      %v47 = vshrl.u32 %v46, 7
      %v48 = vlaneseq
      %v49 = vand.u32 %v48, 127
      %vm50 = vcmp.eq.s32.totalorder %v47, %v49
      %v52 = vlaneseq
      %v53 = vshrl.u32 %v52, 7
      %v54 = vsub.s32 0, %v53
      %v55 = vrot.slane %v45, %v54
      %v57 = vsel %vm50, %v55, 0.0
      %vm58 = vcmask 64512
      %v59 = vsel %vm58, %v57, 0.0
      %60 = vadd.xlane.f32.xlu0 %v59
      %v61 = vpop.xlane.xlu0 %60
      %v62 = vcvt.f32.s32.to.zero.pseudo %v61
      %63 = vst.msk [vmem:[#allocation5] sm:$0xff] %vm40, %v62
    $region21: #{tpu_custom_call.1} parent=1 // pred_fallthru
      _
    %v64 = vld [vmem:[#allocation9] sm:$0xff]
    %s65 = smul.u32 0, 32
    %v66 = vlaneseq
    %v67 = vand.u32 %v66, 127
    %v68 = vstv %s65
    %v69 = vadd.s32 %v68, %v67
    %v70 = vld [vmem:[#allocation5] sm:$0xff]
    %71 = vset.pattern.permute.xlu0 0
    %72 = vperm.xlu0 %71, %v70
    %v73 = vpop.permute.xlu0 %72
    %vm74 = vcmp.eq.s32.totalorder %v69, %v73
    %v75 = vld [vmem:[#allocation4] sm:$0xff]
    %v76 = vsel %vm74, %v64, 0.0
    %vm77 = vcmask 261120
    %v78 = vsel %vm77, %v76, 0.0
    %79 = vadd.xlane.f32.xlu0 %v78
    %v80 = vpop.xlane.xlu0 %79
    %v81 = vadd.f32 %v75, %v80
    %vm82 = vcmask 7168
    %83 = vst.msk [vmem:[#allocation4] sm:$0xff] %vm82, %v81
    %v84 = vld [vmem:[#allocation2] sm:$0xff]
    %v85 = vsel %vm77, %v64, -inf
    %86 = vmax.xlane.f32.xlu0 %v85
    %v87 = vpop.xlane.xlu0 %86
    %v88 = vmax.f32 %v84, %v87
    %90 = vset.pattern.permute.xlu0 0
    %91 = vperm.xlu0 %90, %v88
    %v92 = vpop.permute.xlu0 %91
    %v94 = vsub.f32 %v64, %v92
    %v95 = vmul.f32 %v94, 1.442695
    %v96 = vpow.pop %v95
    %v97 = vld [vmem:[#allocation3] sm:$0xff]
    %v98 = vsub.f32 %v84, %v88
    %v99 = vmul.f32 %v98, 1.442695
    %v100 = vpow.pop %v99
    %v101 = vmul.f32 %v97, %v100
    %v102 = vsel %vm77, %v96, 0.0
    %103 = vadd.xlane.f32.xlu0 %v102
    %v104 = vpop.xlane.xlu0 %103
    %v105 = vadd.f32 %v101, %v104
    %106 = vst.msk [vmem:[#allocation3] sm:$0xff] %vm82, %v105
    %107 = vst.msk [vmem:[#allocation2] sm:$0xff] %vm82, %v88
    // Predicated region
    $region22: #{tpu_custom_call.1} parent=1 // pred_check
      %p108 = pneg %p36
    $region23: #{tpu_custom_call.1} parent=1 // pred_check_branch
      %110 = sbr.rel (%p108) target = $region25
    $region24: #{tpu_custom_call.1} parent=1 // pred_region
      %v111 = vld [vmem:[#allocation3] sm:$0xff]
      %v112 = vlog2.pop %v111
      %v113 = vmul.f32 %v112, 0.6931472
      %v114 = vld [vmem:[#allocation2] sm:$0xff]
      %v115 = vadd.f32 %v113, %v114
      %v116 = vld [vmem:[#allocation4] sm:$0xff]
      %v117 = vsub.f32 %v115, %v116
      %s118 = smul.u32 0, 8
      %v119 = vlaneseq
      %v120 = vshrl.u32 %v119, 7
      %v121 = vstv %s118
      %v122 = vadd.s32 %v121, %v120
      %vm123 = vcmp.lt.s32.totalorder %v122, 8
      %v124 = vsel %vm123, %v117, 0.0
      %v125 = vsel %vm82, %v124, 0.0
      %126 = vadd.xlane.f32.xlu0 %v125
      %v127 = vpop.xlane.xlu0 %126
      %v128 = vrot.slane %v127, 4
      %v129 = vadd.f32 %v127, %v128
      %v130 = vrot.slane %v129, 2
      %v131 = vadd.f32 %v129, %v130
      %v132 = vrot.slane %v131, 1
      %v133 = vadd.f32 %v131, %v132
      %s134 = vtos %v133
      %v135 = vstv %s134
      %vm136 = vcmask 0
      %137 = vst.msk [vmem:[#allocation11] sm:$0x1] %vm136, %v135
    $region25: #{tpu_custom_call.1} parent=1 // pred_fallthru
      _
    // Predicated region
    $region26: #{tpu_custom_call.1} parent=1 // pred_check
      _
    $region27: #{tpu_custom_call.1} parent=1 // pred_check_branch
      %139 = sbr.rel (0) target = $region29
    $region28: #{tpu_custom_call.1} parent=1 // pred_region
      %s141 = ssub.s32 16, 16
      %142 = vsyncadd [#allocation8], %s141
      %s144 = sshll.u32 [#allocation11], 4
      %s145 = int_to_ptr.vmem [resolvable:$true] %s144
      %147 = dma.vmem_to_hbm [thread:$0]  %s145, 16, %s2, [#allocation8]
    $region29: #{tpu_custom_call.1} parent=1 // pred_fallthru
      _
    // Predicated region
    $region30: #{tpu_custom_call.1} parent=1 // pred_check
      _
    $region31: #{tpu_custom_call.1} parent=1 // pred_check_branch
      %149 = sbr.rel (0) target = $region33
    $region32: #{tpu_custom_call.1} parent=1 // pred_region
      %150 = dma.done [#allocation8], 16
    $region33: #{tpu_custom_call.1} parent=1 // pred_fallthru
      _
    %151 = vsyncpa [#allocation7], 1
    %152 = vsyncpa [#allocation10], 1
    %153 = vsyncpa [#allocation8], 1

</llo_original>
